<compile_context>
chip_gen: v6e
topology: v6e:2x2x1
jax: 0.10.0
libtpu: 0.0.40
codegen_flags: <defaults>
</compile_context>

<pallas_src>
import functools
import numpy as np
import jax
import jax.numpy as jnp
from jax import lax
from jax.experimental import pallas as pl
from jax.experimental.pallas import tpu as pltpu


def _round_up(x, m):
    return ((x + m - 1) // m) * m


# ----------------------------- Pallas kernel ---------------------------------
def _etf_linear_kernel(*refs, has_mask, use_bf16_mxu):
    """refs = (x, w, [mask], bias, out, acc_scratch); grid = (M, N, K) tiles."""
    if has_mask:
        x_ref, w_ref, m_ref, b_ref, o_ref, acc_ref = refs
    else:
        x_ref, w_ref, b_ref, o_ref, acc_ref = refs
        m_ref = None

    k = pl.program_id(2)

    @pl.when(k == 0)
    def _():
        # Fold the bias into the accumulator init (one broadcast, not per-K-step,
        # and no extra VPU pass over the output tile at the end).
        acc_ref[...] = jnp.broadcast_to(
            b_ref[...].astype(jnp.float32), acc_ref.shape)

    w = w_ref[...]                                            # (tn, tk)
    if m_ref is not None:
        # Mask multiply stays in the weight dtype (f32) -> cheap on all gens.
        w = w * m_ref[...].astype(w.dtype)
    x = x_ref[...]                                            # (tm, tk)
    if use_bf16_mxu:
        x = x.astype(jnp.bfloat16)
        w = w.astype(jnp.bfloat16)

    # Contract on the K (lane) axis of BOTH operands -> no transpose op,
    # f32 accumulation on the MXU.
    acc_ref[...] += lax.dot_general(
        x, w,
        dimension_numbers=(((1,), (1,)), ((), ())),
        preferred_element_type=jnp.float32)

    @pl.when(k == pl.num_programs(2) - 1)
    def _():
        o_ref[...] = acc_ref[...].astype(o_ref.dtype)


# ------------------------------ host wrapper ----------------------------------
def w_dropout_etf_forward(x, weight, mask, bias, *, training=True,
                          tm=128, tn=256, tk=512, use_bf16_mxu=False):
    """x: (B, in), weight/mask: (out, in), bias: (out,) -> (B, out)."""
    B, in_f = x.shape
    out_f, _ = weight.shape

    # ---- tile sizes / padded, lane-dense shapes ------------------------------
    # Output lane axis (N) padded to >=128 so stores are unmasked; K padded to
    # 128 multiples; M padded to the 8-sublane multiple.  Tiles sized well under
    # the 32 MiB scoped-VMEM budget so they also fit v7x's 64 MiB physical VMEM.
    tm = min(tm, _round_up(B, 8))
    tn = min(tn, _round_up(out_f, 128))
    tk = min(tk, _round_up(in_f, 128))
    M = _round_up(B, tm)
    N = _round_up(out_f, tn)
    K = _round_up(in_f, tk)

    xp = jnp.zeros((M, K), x.dtype).at[:B, :in_f].set(x)
    wp = jnp.zeros((N, K), weight.dtype).at[:out_f, :in_f].set(weight)
    bp = jnp.zeros((1, N), jnp.float32).at[0, :out_f].set(bias.astype(jnp.float32))

    grid = (M // tm, N // tn, K // tk)

    x_spec = pl.BlockSpec((tm, tk), lambda i, j, k: (i, k))
    w_spec = pl.BlockSpec((tn, tk), lambda i, j, k: (j, k))
    b_spec = pl.BlockSpec((1, tn), lambda i, j, k: (0, j))
    o_spec = pl.BlockSpec((tm, tn), lambda i, j, k: (i, j))

    operands = [xp, wp]
    in_specs = [x_spec, w_spec]
    bytes_accessed = xp.size * xp.dtype.itemsize + wp.size * wp.dtype.itemsize

    if training:
        # Fixed keep-mask: stream it as bf16 (0/1 are exact) -> half the bytes.
        mp = (jnp.zeros((N, K), jnp.bfloat16)
              .at[:out_f, :in_f].set(mask.astype(jnp.bfloat16)))
        operands.append(mp)
        in_specs.append(pl.BlockSpec((tn, tk), lambda i, j, k: (j, k)))
        bytes_accessed += mp.size * mp.dtype.itemsize
    # Eval mode: no mask operand at all (no ones-mask DMA, no VPU multiply).

    operands.append(bp)
    in_specs.append(b_spec)
    bytes_accessed += bp.size * bp.dtype.itemsize
    bytes_accessed += M * N * jnp.dtype(x.dtype).itemsize      # output writeback

    kernel = functools.partial(_etf_linear_kernel,
                               has_mask=training,
                               use_bf16_mxu=use_bf16_mxu)

    out_padded = pl.pallas_call(
        kernel,
        out_shape=jax.ShapeDtypeStruct((M, N), x.dtype),
        grid_spec=pltpu.PrefetchScalarGridSpec(
            num_scalar_prefetch=0,
            grid=grid,
            in_specs=in_specs,
            out_specs=o_spec,
            scratch_shapes=[pltpu.VMEM((tm, tn), jnp.float32)]),
        compiler_params=pltpu.CompilerParams(
            dimension_semantics=("parallel", "parallel", "arbitrary"),
            vmem_limit_bytes=32 * 1024 * 1024),
        cost_estimate=pl.CostEstimate(
            flops=2 * M * N * K,
            transcendentals=0,
            bytes_accessed=int(bytes_accessed)),
    )(*operands)

    return out_padded[:B, :out_f]


# ------------------------ deterministic parameter init ------------------------
def make_etf_weight(in_features, out_features, key):
    """Replicates ETF_Classifier.ori_M, then transposes -> (out, in)."""
    a = jax.random.normal(key, (in_features, in_features), dtype=jnp.float32)
    q, _ = jnp.linalg.qr(a)
    P = q[:, :out_features]                                     # (in, out)
    C = out_features
    I = jnp.eye(C, dtype=jnp.float32)
    one = jnp.ones((C, C), dtype=jnp.float32)
    M = np.sqrt(C / (C - 1)) * (P @ (I - (1.0 / C) * one))      # (in, out)
    return M.T                                                  # (out, in)


def make_dropout_mask(shape, dropout_rate, key):
    """(torch.rand(shape) > dropout_rate).float() equivalent (raw keep-mask,
    no 1/(1-p) rescale, matching the reference module)."""
    u = jax.random.uniform(key, shape, dtype=jnp.float32)
    return (u > dropout_rate).astype(jnp.float32)


# ----------------------------------- main --------------------------------------
if __name__ == "__main__":
    B, in_features, out_features = 8, 32, 16
    dropout_rate = 0.5

    root = jax.random.PRNGKey(0)
    k_x, k_w, k_b, k_m = jax.random.split(root, 4)

    x = jax.random.normal(k_x, (B, in_features), dtype=jnp.float32)
    weight = make_etf_weight(in_features, out_features, k_w)        # (out, in)
    # nn.Linear default bias init: U(-1/sqrt(in), 1/sqrt(in))
    bound = 1.0 / np.sqrt(in_features)
    bias = jax.random.uniform(k_b, (out_features,), dtype=jnp.float32,
                              minval=-bound, maxval=bound)
    mask = make_dropout_mask((out_features, in_features), dropout_rate, k_m)

    # --- training mode (mask applied) ---
    y = jax.block_until_ready(
        w_dropout_etf_forward(x, weight, mask, bias, training=True))
    y_ref = x @ (weight * mask).T + bias
    np.testing.assert_allclose(np.asarray(y), np.asarray(y_ref),
                               rtol=1e-5, atol=1e-5)

    # --- eval mode (no mask operand at all) ---
    y_eval = jax.block_until_ready(
        w_dropout_etf_forward(x, weight, mask, bias, training=False))
    np.testing.assert_allclose(np.asarray(y_eval),
                               np.asarray(x @ weight.T + bias),
                               rtol=1e-5, atol=1e-5)

    # --- optional bf16-MXU path (f32 accumulation), looser tolerance ---
    y_bf16 = jax.block_until_ready(
        w_dropout_etf_forward(x, weight, mask, bias, training=True,
                              use_bf16_mxu=True))
    np.testing.assert_allclose(np.asarray(y_bf16), np.asarray(y_ref),
                               rtol=2e-2, atol=2e-2)

    print("KERNEL_OK")
</pallas_src>

<mosaic_0001>
module attributes {stable_mosaic.version = 11 : i64} {
  func.func @_etf_linear_kernel(%arg0: i32, %arg1: i32, %arg2: i32, %arg3: memref<8x128xf32, #tpu.memory_space<vmem>>, %arg4: memref<128x128xf32, #tpu.memory_space<vmem>>, %arg5: memref<128x128xbf16, #tpu.memory_space<vmem>>, %arg6: memref<1x128xf32, #tpu.memory_space<vmem>>, %arg7: memref<8x128xf32, #tpu.memory_space<vmem>>, %arg8: memref<8x128xf32, #tpu.memory_space<vmem>>) attributes {dimension_semantics = [#tpu.dimension_semantics<parallel>, #tpu.dimension_semantics<parallel>, #tpu.dimension_semantics<arbitrary>], iteration_bounds = array<i64: 1, 1, 1>, scalar_prefetch = 0 : i64, scratch_operands = 1 : i64, tpu.core_type = #tpu.core_type<tc>, window_params = [{transform_indices = @transform_0, window_bounds = array<i64: 8, 128>}, {transform_indices = @transform_1, window_bounds = array<i64: 128, 128>}, {transform_indices = @transform_2, window_bounds = array<i64: 128, 128>}, {transform_indices = @transform_3, window_bounds = array<i64: 1, 128>}, {transform_indices = @transform_4, window_bounds = array<i64: 8, 128>}]} {
    %c0_i32 = arith.constant 0 : i32
    %0 = arith.cmpi eq, %arg2, %c0_i32 : i32
    %1 = arith.extui %0 : i1 to i32
    %c0_i32_0 = arith.constant 0 : i32
    %2 = arith.cmpi ne, %1, %c0_i32_0 : i32
    scf.if %2 {
      %c0_12 = arith.constant 0 : index
      %c0_13 = arith.constant 0 : index
      %15 = vector.load %arg6[%c0_12, %c0_13] : memref<1x128xf32, #tpu.memory_space<vmem>>, vector<1x128xf32>
      %16 = vector.shape_cast %15 : vector<1x128xf32> to vector<1x128xf32>
      %17 = vector.broadcast %16 : vector<1x128xf32> to vector<8x128xf32>
      %c0_14 = arith.constant 0 : index
      %c0_15 = arith.constant 0 : index
      %18 = vector.load %arg8[%c0_14, %c0_15] : memref<8x128xf32, #tpu.memory_space<vmem>>, vector<8x128xf32>
      tpu.vector_store %arg8[%c0_14, %c0_15], %17 {strides = array<i32>} : memref<8x128xf32, #tpu.memory_space<vmem>>, vector<8x128xf32>,
    } else {
    }
    %c0 = arith.constant 0 : index
    %c0_1 = arith.constant 0 : index
    %3 = vector.load %arg4[%c0, %c0_1] : memref<128x128xf32, #tpu.memory_space<vmem>>, vector<128x128xf32>
    %c0_2 = arith.constant 0 : index
    %c0_3 = arith.constant 0 : index
    %4 = vector.load %arg5[%c0_2, %c0_3] : memref<128x128xbf16, #tpu.memory_space<vmem>>, vector<128x128xbf16>
    %5 = arith.extf %4 : vector<128x128xbf16> to vector<128x128xf32>
    %6 = arith.mulf %3, %5 : vector<128x128xf32>
    %c0_4 = arith.constant 0 : index
    %c0_5 = arith.constant 0 : index
    %7 = vector.load %arg3[%c0_4, %c0_5] : memref<8x128xf32, #tpu.memory_space<vmem>>, vector<8x128xf32>
    %c0_6 = arith.constant 0 : index
    %c0_7 = arith.constant 0 : index
    %8 = vector.load %arg8[%c0_6, %c0_7] : memref<8x128xf32, #tpu.memory_space<vmem>>, vector<8x128xf32>
    %cst = arith.constant dense<0.000000e+00> : vector<8x128xf32>
    %9 = tpu.matmul %7, %6, %cst {dimension_numbers = #tpu.dot_dimension_numbers<[1], [1], [0], [0], [0, 0, 1, 0], [], []>} : vector<8x128xf32>, vector<128x128xf32>, vector<8x128xf32> -> vector<8x128xf32>
    %10 = arith.addf %8, %9 : vector<8x128xf32>
    %c0_8 = arith.constant 0 : index
    %c0_9 = arith.constant 0 : index
    %11 = vector.load %arg8[%c0_8, %c0_9] : memref<8x128xf32, #tpu.memory_space<vmem>>, vector<8x128xf32>
    tpu.vector_store %arg8[%c0_8, %c0_9], %10 {strides = array<i32>} : memref<8x128xf32, #tpu.memory_space<vmem>>, vector<8x128xf32>,
    %c0_i32_10 = arith.constant 0 : i32
    %12 = arith.cmpi eq, %arg2, %c0_i32_10 : i32
    %13 = arith.extui %12 : i1 to i32
    %c0_i32_11 = arith.constant 0 : i32
    %14 = arith.cmpi ne, %13, %c0_i32_11 : i32
    scf.if %14 {
      %c0_12 = arith.constant 0 : index
      %c0_13 = arith.constant 0 : index
      %15 = vector.load %arg8[%c0_12, %c0_13] : memref<8x128xf32, #tpu.memory_space<vmem>>, vector<8x128xf32>
      %c0_14 = arith.constant 0 : index
      %c0_15 = arith.constant 0 : index
      %16 = vector.load %arg7[%c0_14, %c0_15] : memref<8x128xf32, #tpu.memory_space<vmem>>, vector<8x128xf32>
      tpu.vector_store %arg7[%c0_14, %c0_15], %15 {strides = array<i32>} : memref<8x128xf32, #tpu.memory_space<vmem>>, vector<8x128xf32>,
    } else {
    }
    return
  }
  func.func @transform_0(%arg0: i32, %arg1: i32, %arg2: i32) -> (i32, i32) {
    %c0_i32 = arith.constant 0 : i32
    return %arg0, %arg2 : i32, i32
  }
  func.func @transform_1(%arg0: i32, %arg1: i32, %arg2: i32) -> (i32, i32) {
    %c0_i32 = arith.constant 0 : i32
    return %arg1, %arg2 : i32, i32
  }
  func.func @transform_2(%arg0: i32, %arg1: i32, %arg2: i32) -> (i32, i32) {
    %c0_i32 = arith.constant 0 : i32
    return %arg1, %arg2 : i32, i32
  }
  func.func @transform_3(%arg0: i32, %arg1: i32, %arg2: i32) -> (i32, i32) {
    %c0_i32 = arith.constant 0 : i32
    %c0_i32_0 = arith.constant 0 : i32
    return %c0_i32, %arg1 : i32, i32
  }
  func.func @transform_4(%arg0: i32, %arg1: i32, %arg2: i32) -> (i32, i32) {
    %c0_i32 = arith.constant 0 : i32
    return %arg0, %arg1 : i32, i32
  }
}

</mosaic_0001>

<llo_original>
// kernel: tpu_custom_call.1
$region0: #{tpu_custom_call.1}
  #allocation0 [shape = 'u32[]', space=smem, size = 0x4, offset = 0x4, fixed_abs, tag = 'smem constant byte address 0x4 - core index']
  #allocation1 [shape = 'u32[144,128]{1,0:T(1,128)}', space=vmem, size = 0x12000, scoped, tag = 'internal scratch']
  #allocation2 [shape = 'f32[8,128]{1,0:T(8,128)}', space=vmem, size = 0x1000, scoped, tag = 'scratch operand']
  %s0 = inlined_call_operand.hbm [shape: f32[8,128], index: 0, kind: input, shape index: {}]
  %s1 = inlined_call_operand.hbm [shape: f32[128,128], index: 1, kind: input, shape index: {}]
  %s2 = inlined_call_operand.hbm [shape: bf16[128,128], index: 2, kind: input, shape index: {}]
  %s3 = inlined_call_operand.vmem [shape: f32[1,128], index: 3, kind: input, shape index: {}]
  %s4 = inlined_call_operand.hbm [shape: f32[8,128], index: 4, kind: output, shape index: {}]
  %s5 = sld [smem:[#allocation0]]
  $region46: #{tpu_custom_call.1} parent=0
    _
  %s7 = ssub.s32 1, %s5
  %s8 = scalar_select 0, %s7, %s5
  $region1: #{tpu_custom_call.1} parent=0
    #allocation3 [shape = 'u8[4096]{0}', space=vmem, size = 0x1000, scoped, tag = 'input window, operand 0, single buffered']
    #allocation4 [shape = 's32[1]{0}', space=sflag, size = 0x4, scoped, tag = 'scoped memory for tpu_custom_call.1']
    #allocation5 [shape = 's32[1]{0}', space=sflag, size = 0x4, scoped, tag = 'scoped memory for tpu_custom_call.1']
    #allocation6 [shape = 'u8[65536]{0}', space=vmem, size = 0x10000, scoped, tag = 'input window, operand 1, single buffered']
    #allocation7 [shape = 's32[1]{0}', space=sflag, size = 0x4, scoped, tag = 'scoped memory for tpu_custom_call.1']
    #allocation8 [shape = 'u8[32768]{0}', space=vmem, size = 0x8000, scoped, tag = 'input window, operand 2, single buffered']
    #allocation9 [shape = 'u8[4096]{0}', space=vmem, size = 0x1000, scoped, tag = 'output window, operand 0, single buffered']
    %9 = vsyncpa [#allocation4], 0
    %10 = vsyncpa [#allocation7], 0
    %11 = vsyncpa [#allocation5], 0
    // Predicated region
    $region2: #{tpu_custom_call.1} parent=1 // pred_check
      _
    $region3: #{tpu_custom_call.1} parent=1 // pred_check_branch
      %13 = sbr.rel (0) target = $region5
    $region4: #{tpu_custom_call.1} parent=1 // pred_region
      %s15 = ssub.s32 128, 128
      %16 = vsyncadd [#allocation4], %s15
      %s18 = sshll.u32 [#allocation3], 4
      %s19 = int_to_ptr.vmem [resolvable:$true] %s18
      %21 = dma.hbm_to_vmem [thread:$0]  %s0, 128, %s19, [#allocation4]
    $region5: #{tpu_custom_call.1} parent=1 // pred_fallthru
      _
    // Predicated region
    $region6: #{tpu_custom_call.1} parent=1 // pred_check
      _
    $region7: #{tpu_custom_call.1} parent=1 // pred_check_branch
      %23 = sbr.rel (0) target = $region9
    $region8: #{tpu_custom_call.1} parent=1 // pred_region
      %s25 = ssub.s32 2048, 2048
      %26 = vsyncadd [#allocation7], %s25
      %s27 = sshll.u32 [#allocation6], 4
      %s28 = int_to_ptr.vmem [resolvable:$true] %s27
      %33 = dma.hbm_to_vmem [thread:$0]  %s1, 2048, %s28, [#allocation7], 128, 128, 8
    $region9: #{tpu_custom_call.1} parent=1 // pred_fallthru
      _
    // Predicated region
    $region10: #{tpu_custom_call.1} parent=1 // pred_check
      _
    $region11: #{tpu_custom_call.1} parent=1 // pred_check_branch
      %35 = sbr.rel (0) target = $region13
    $region12: #{tpu_custom_call.1} parent=1 // pred_region
      %s37 = ssub.s32 1024, 1024
      %38 = vsyncadd [#allocation7], %s37
      %s39 = sshll.u32 [#allocation8], 4
      %s40 = int_to_ptr.vmem [resolvable:$true] %s39
      %45 = dma.hbm_to_vmem [thread:$0]  %s2, 1024, %s40, [#allocation7], 64, 64, 4
    $region13: #{tpu_custom_call.1} parent=1 // pred_fallthru
      _
    // Predicated region
    $region14: #{tpu_custom_call.1} parent=1 // pred_check
      _
    $region15: #{tpu_custom_call.1} parent=1 // pred_check_branch
      %47 = sbr.rel (0) target = $region17
    $region16: #{tpu_custom_call.1} parent=1 // pred_region
      _
    $region17: #{tpu_custom_call.1} parent=1 // pred_fallthru
      _
    // Predicated region
    $region18: #{tpu_custom_call.1} parent=1 // pred_check
      _
    $region19: #{tpu_custom_call.1} parent=1 // pred_check_branch
      %49 = sbr.rel (0) target = $region21
    $region20: #{tpu_custom_call.1} parent=1 // pred_region
      %50 = dma.done [#allocation4], 128
    $region21: #{tpu_custom_call.1} parent=1 // pred_fallthru
      _
    // Predicated region
    $region22: #{tpu_custom_call.1} parent=1 // pred_check
      _
    $region23: #{tpu_custom_call.1} parent=1 // pred_check_branch
      %52 = sbr.rel (0) target = $region25
    $region24: #{tpu_custom_call.1} parent=1 // pred_region
      %53 = dma.done [#allocation7], 2048
    $region25: #{tpu_custom_call.1} parent=1 // pred_fallthru
      _
    // Predicated region
    $region26: #{tpu_custom_call.1} parent=1 // pred_check
      _
    $region27: #{tpu_custom_call.1} parent=1 // pred_check_branch
      %55 = sbr.rel (0) target = $region29
    $region28: #{tpu_custom_call.1} parent=1 // pred_region
      %56 = dma.done [#allocation7], 1024
    $region29: #{tpu_custom_call.1} parent=1 // pred_fallthru
      _
    %p57 = scmp.eq.s32.totalorder 0, 0
    // Predicated region
    $region30: #{tpu_custom_call.1} parent=1 // pred_check
      %p58 = pneg %p57
    $region31: #{tpu_custom_call.1} parent=1 // pred_check_branch
      %60 = sbr.rel (%p58) target = $region33
    $region32: #{tpu_custom_call.1} parent=1 // pred_region
      %v61 = vld [vmem:[%s3] sm:$0x1]
      %v63 = vlaneseq
      %v64 = vshrl.u32 %v63, 7
      %v65 = vsub.s32 0, %v64
      %v66 = vrot.slane %v61, %v65
      %68 = vst [vmem:[#allocation2] sm:$0xff] %v66
    $region33: #{tpu_custom_call.1} parent=1 // pred_fallthru
      _
    %v69 = vld [vmem:[#allocation6] sm:$0xff]
    %v70 = vld [vmem:[#allocation6 + $0x8] sm:$0xff]
    %v71 = vld [vmem:[#allocation6 + $0x10] sm:$0xff]
    %v72 = vld [vmem:[#allocation6 + $0x18] sm:$0xff]
    %v73 = vld [vmem:[#allocation6 + $0x20] sm:$0xff]
    %v74 = vld [vmem:[#allocation6 + $0x28] sm:$0xff]
    %v75 = vld [vmem:[#allocation6 + $0x30] sm:$0xff]
    %v76 = vld [vmem:[#allocation6 + $0x38] sm:$0xff]
    %v77 = vld [vmem:[#allocation6 + $0x40] sm:$0xff]
    %v78 = vld [vmem:[#allocation6 + $0x48] sm:$0xff]
    %v79 = vld [vmem:[#allocation6 + $0x50] sm:$0xff]
    %v80 = vld [vmem:[#allocation6 + $0x58] sm:$0xff]
    %v81 = vld [vmem:[#allocation6 + $0x60] sm:$0xff]
    %v82 = vld [vmem:[#allocation6 + $0x68] sm:$0xff]
    %v83 = vld [vmem:[#allocation6 + $0x70] sm:$0xff]
    %v84 = vld [vmem:[#allocation6 + $0x78] sm:$0xff]
    %v85 = vld [vmem:[#allocation8] sm:$0xf]
    %v86 = vld [vmem:[#allocation8 + $0x4] sm:$0xf]
    %v87 = vld [vmem:[#allocation8 + $0x8] sm:$0xf]
    %v88 = vld [vmem:[#allocation8 + $0xc] sm:$0xf]
    %v89 = vld [vmem:[#allocation8 + $0x10] sm:$0xf]
    %v90 = vld [vmem:[#allocation8 + $0x14] sm:$0xf]
    %v91 = vld [vmem:[#allocation8 + $0x18] sm:$0xf]
    %v92 = vld [vmem:[#allocation8 + $0x1c] sm:$0xf]
    %v93 = vld [vmem:[#allocation8 + $0x20] sm:$0xf]
    %v94 = vld [vmem:[#allocation8 + $0x24] sm:$0xf]
    %v95 = vld [vmem:[#allocation8 + $0x28] sm:$0xf]
    %v96 = vld [vmem:[#allocation8 + $0x2c] sm:$0xf]
    %v97 = vld [vmem:[#allocation8 + $0x30] sm:$0xf]
    %v98 = vld [vmem:[#allocation8 + $0x34] sm:$0xf]
    %v99 = vld [vmem:[#allocation8 + $0x38] sm:$0xf]
    %v100 = vld [vmem:[#allocation8 + $0x3c] sm:$0xf]
    %v101 = vunpack.c.l.bf16 %v85
    %v102 = vunpack.c.l.bf16 %v86
    %v103 = vunpack.c.l.bf16 %v87
    %v104 = vunpack.c.l.bf16 %v88
    %v105 = vunpack.c.l.bf16 %v89
    %v106 = vunpack.c.l.bf16 %v90
    %v107 = vunpack.c.l.bf16 %v91
    %v108 = vunpack.c.l.bf16 %v92
    %v109 = vunpack.c.l.bf16 %v93
    %v110 = vunpack.c.l.bf16 %v94
    %v111 = vunpack.c.l.bf16 %v95
    %v112 = vunpack.c.l.bf16 %v96
    %v113 = vunpack.c.l.bf16 %v97
    %v114 = vunpack.c.l.bf16 %v98
    %v115 = vunpack.c.l.bf16 %v99
    %v116 = vunpack.c.l.bf16 %v100
    %v117 = vmul.f32 %v69, %v101
    %v118 = vmul.f32 %v70, %v102
    %v119 = vmul.f32 %v71, %v103
    %v120 = vmul.f32 %v72, %v104
    %v121 = vmul.f32 %v73, %v105
    %v122 = vmul.f32 %v74, %v106
    %v123 = vmul.f32 %v75, %v107
    %v124 = vmul.f32 %v76, %v108
    %v125 = vmul.f32 %v77, %v109
    %v126 = vmul.f32 %v78, %v110
    %v127 = vmul.f32 %v79, %v111
    %v128 = vmul.f32 %v80, %v112
    %v129 = vmul.f32 %v81, %v113
    %v130 = vmul.f32 %v82, %v114
    %v131 = vmul.f32 %v83, %v115
    %v132 = vmul.f32 %v84, %v116
    %v133 = vld [vmem:[#allocation3] sm:$0xff]
    %v134 = vld [vmem:[#allocation2] sm:$0xff]
    %135 = vmatprep.subr.mxu0 0.0
    %136 = vmatpush1.xpose.msra.mxu0 %v132
    %137 = vmatprep.subr.mxu0 0.0
    %138 = vmatpush1.xpose.msra.mxu0 %v131
    %139 = vmatprep.subr.mxu0 0.0
    %140 = vmatpush1.xpose.msra.mxu0 %v130
    %141 = vmatprep.subr.mxu0 0.0
    %142 = vmatpush1.xpose.msra.mxu0 %v129
    %143 = vmatprep.subr.mxu0 0.0
    %144 = vmatpush1.xpose.msra.mxu0 %v128
    %145 = vmatprep.subr.mxu0 0.0
    %146 = vmatpush1.xpose.msra.mxu0 %v127
    %147 = vmatprep.subr.mxu0 0.0
    %148 = vmatpush1.xpose.msra.mxu0 %v126
    %149 = vmatprep.subr.mxu0 0.0
    %150 = vmatpush1.xpose.msra.mxu0 %v125
    %151 = vmatprep.subr.mxu0 0.0
    %152 = vmatpush1.xpose.msra.mxu0 %v124
    %153 = vmatprep.subr.mxu0 0.0
    %154 = vmatpush1.xpose.msra.mxu0 %v123
    %155 = vmatprep.subr.mxu0 0.0
    %156 = vmatpush1.xpose.msra.mxu0 %v122
    %157 = vmatprep.subr.mxu0 0.0
    %158 = vmatpush1.xpose.msra.mxu0 %v121
    %159 = vmatprep.subr.mxu0 0.0
    %160 = vmatpush1.xpose.msra.mxu0 %v120
    %161 = vmatprep.subr.mxu0 0.0
    %162 = vmatpush1.xpose.msra.mxu0 %v119
    %163 = vmatprep.subr.mxu0 0.0
    %164 = vmatpush1.xpose.msra.mxu0 %v118
    %165 = vmatprep.subr.mxu0 0.0
    %166 = vmatpush1.xpose.msra.mxu0 %v117
    %167 = vmatprep.subr.mxu0 0.0
    %168 = vmatpush2.xpose.msra.mxu0 0.0
    %169 = vmatprep.subr.mxu0 0.0
    %170 = vmatpush2.xpose.msra.mxu0 0.0
    %171 = vmatprep.subr.mxu0 0.0
    %172 = vmatpush2.xpose.msra.mxu0 0.0
    %173 = vmatprep.subr.mxu0 0.0
    %174 = vmatpush2.xpose.msra.mxu0 0.0
    %175 = vmatprep.subr.mxu0 0.0
    %176 = vmatpush2.xpose.msra.mxu0 0.0
    %177 = vmatprep.subr.mxu0 0.0
    %178 = vmatpush2.xpose.msra.mxu0 0.0
    %179 = vmatprep.subr.mxu0 0.0
    %180 = vmatpush2.xpose.msra.mxu0 0.0
    %181 = vmatprep.subr.mxu0 0.0
    %182 = vmatpush2.xpose.msra.mxu0 0.0
    %183 = vmatprep.subr.mxu0 0.0
    %184 = vmatpush2.xpose.msra.mxu0 0.0
    %185 = vmatprep.subr.mxu0 0.0
    %186 = vmatpush2.xpose.msra.mxu0 0.0
    %187 = vmatprep.subr.mxu0 0.0
    %188 = vmatpush2.xpose.msra.mxu0 0.0
    %189 = vmatprep.subr.mxu0 0.0
    %190 = vmatpush2.xpose.msra.mxu0 0.0
    %191 = vmatprep.subr.mxu0 0.0
    %192 = vmatpush2.xpose.msra.mxu0 0.0
    %193 = vmatprep.subr.mxu0 0.0
    %194 = vmatpush2.xpose.msra.mxu0 0.0
    %195 = vmatprep.subr.mxu0 0.0
    %196 = vmatpush2.xpose.msra.mxu0 0.0
    %197 = vmatprep.subr.mxu0 0.0
    %198 = vmatpush2.xpose.msra.mxu0 0.0
    %199 = vmatprep.mubr.f32.mxu0 0.0
    %200 = vmatmul.mubr.f32.gmra.mxu0 %v133
    %v201 = vpop.f32.mrf.mxu0
    %v202 = vadd.f32 0.0, %v201
    %v203 = vpop.f32.mrf.mxu0
    %204 = vdwg.mxu0
    %v205 = vadd.f32 %v134, %v202
    %206 = vst [vmem:[#allocation2] sm:$0xff] %v205
    // Predicated region
    $region34: #{tpu_custom_call.1} parent=1 // pred_check
      %p207 = pneg %p57
    $region35: #{tpu_custom_call.1} parent=1 // pred_check_branch
      %209 = sbr.rel (%p207) target = $region37
    $region36: #{tpu_custom_call.1} parent=1 // pred_region
      %v210 = vld [vmem:[#allocation2] sm:$0xff]
      %211 = vst [vmem:[#allocation9] sm:$0xff] %v210
    $region37: #{tpu_custom_call.1} parent=1 // pred_fallthru
      _
    // Predicated region
    $region38: #{tpu_custom_call.1} parent=1 // pred_check
      _
    $region39: #{tpu_custom_call.1} parent=1 // pred_check_branch
      %213 = sbr.rel (0) target = $region41
    $region40: #{tpu_custom_call.1} parent=1 // pred_region
      %s215 = ssub.s32 128, 128
      %216 = vsyncadd [#allocation5], %s215
      %s218 = sshll.u32 [#allocation9], 4
      %s219 = int_to_ptr.vmem [resolvable:$true] %s218
      %221 = dma.vmem_to_hbm [thread:$0]  %s219, 128, %s4, [#allocation5]
    $region41: #{tpu_custom_call.1} parent=1 // pred_fallthru
      _
    // Predicated region
    $region42: #{tpu_custom_call.1} parent=1 // pred_check
      _
    $region43: #{tpu_custom_call.1} parent=1 // pred_check_branch
      %223 = sbr.rel (0) target = $region45
    $region44: #{tpu_custom_call.1} parent=1 // pred_region
      %224 = dma.done [#allocation5], 128
    $region45: #{tpu_custom_call.1} parent=1 // pred_fallthru
      _
    %225 = vsyncpa [#allocation4], 1
    %226 = vsyncpa [#allocation7], 1
    %227 = vsyncpa [#allocation5], 1

</llo_original>
